<compile_context>
chip_gen: v7x
topology: tpu7x:2x2x1
jax: 0.10.0
libtpu: 0.0.40
codegen_flags: <defaults>
</compile_context>

<pallas_src>
import jax
import jax.numpy as jnp
from jax.experimental import pallas as pl
from jax.experimental.pallas import tpu as pltpu

_NUM_APB = 3            # nn.Embedding(3, out_dim)
_NUM_LSN = 5 + 1 + 30   # nn.Embedding(36, out_dim)
_UNROLL_LIMIT = 8       # static-unroll threshold for the per-row gather loop


def _fused_gather_kernel(apb_ids_ref, lsn_ids_ref, table_ref, apb_ref, lsn_ref):
    """apb[b] = table[clamp(apb_ids[b])];  lsn[b] = table[clamp(lsn_ids[b] + 3)].

    apb_ids_ref : SMEM (B,) int32     active/passive ids (scalar path)
    lsn_ids_ref : SMEM (B,) int32     listener ids (scalar path)
    table_ref   : VMEM (V, D)         fused table: rows 0..2 apb, rows 3..V-1 lsn
    apb_ref     : VMEM (B, D)         gathered active/passive embeddings
    lsn_ref     : VMEM (B, D)         gathered listener embeddings (reshaped to
                                      (B, 1, D) at the wrapper boundary)
    """
    bsz = apb_ref.shape[0]
    vocab = table_ref.shape[0]

    def gather_one(b, carry):
        # Id prep on the scalar path (was wrapper-side concat/add/clip).
        # Clamp defensively into each sub-table's own row range.
        a_idx = jnp.clip(apb_ids_ref[b], 0, _NUM_APB - 1)
        l_idx = jnp.clip(lsn_ids_ref[b] + _NUM_APB, _NUM_APB, vocab - 1)
        # Direct dynamic row copies: vld from the packed table, vst to the
        # packed outputs.  No MXU, no one-hot construction.
        apb_ref[pl.ds(b, 1), :] = table_ref[pl.ds(a_idx, 1), :]
        lsn_ref[pl.ds(b, 1), :] = table_ref[pl.ds(l_idx, 1), :]
        return carry

    if bsz <= _UNROLL_LIMIT:
        for b in range(bsz):            # tiny, static -> unrolled at trace time
            gather_one(b, 0)
    else:
        # Guard against code-size / live-range blow-up for large batches.
        jax.lax.fori_loop(0, bsz, gather_one, 0, unroll=True)


@jax.jit
def _fused_forward(fused_table, active_passive_bit, lsn_id):
    """One Pallas call gathering both embeddings.

    fused_table        : (3 + 36, D) float32   (packed 2-D table)
    active_passive_bit : (B,) integer
    lsn_id             : (B,) integer
    returns (apb (B, D), lsnemb (B, 1, D))
    """
    bsz = active_passive_bit.shape[0]
    _, out_dim = fused_table.shape

    # torch .int() semantics: truncation toward zero for float inputs; a no-op
    # (removed by XLA) when callers already pass int32.
    apb_ids = active_passive_bit.astype(jnp.int32)
    lsn_ids = lsn_id.astype(jnp.int32)

    apb, lsn_rows = pl.pallas_call(
        _fused_gather_kernel,
        out_shape=(
            jax.ShapeDtypeStruct((bsz, out_dim), fused_table.dtype),
            jax.ShapeDtypeStruct((bsz, out_dim), fused_table.dtype),
        ),
        in_specs=[
            pl.BlockSpec(memory_space=pltpu.MemorySpace.SMEM),   # apb ids  (scalar path)
            pl.BlockSpec(memory_space=pltpu.MemorySpace.SMEM),   # lsn ids  (scalar path)
            pl.BlockSpec(memory_space=pltpu.MemorySpace.VMEM),   # fused table (~20 KiB padded)
        ],
        out_specs=(
            pl.BlockSpec(memory_space=pltpu.MemorySpace.VMEM),
            pl.BlockSpec(memory_space=pltpu.MemorySpace.VMEM),
        ),
    )(apb_ids, lsn_ids, fused_table)

    # (B, D) -> (B, 1, D) is layout-compatible: bitcast/alias, not an HBM copy.
    return apb, lsn_rows[:, None, :]


class TextAudioMotionFuserPallas:
    """JAX/Pallas port of TextAudioMotionFuser (forward pass only)."""

    def __init__(self, out_dim, lat1=64, key=jax.random.PRNGKey(42)):
        self.out_dim = out_dim
        k1, k2, k3, k4 = jax.random.split(key, 4)
        # nn.Embedding(3, out_dim)
        self.active_passive_emb = jax.random.normal(k1, (_NUM_APB, out_dim), jnp.float32)
        # nn.Embedding(5 + 1 + 30, out_dim)
        self.lsn_id_emb = jax.random.normal(k2, (_NUM_LSN, out_dim), jnp.float32)
        # Packed 2-D fused table built ONCE (rows 0..2 apb, rows 3..38 lsn).
        self.fused_table = jnp.concatenate(
            [self.active_passive_emb, self.lsn_id_emb], axis=0
        )                                                          # (39, D)
        # latent_proj params exist in __init__ but are UNUSED in forward();
        # kept only for parity with the torch module.
        self.lp_w1 = jax.random.normal(k3, (lat1, 128), jnp.float32) * 0.02
        self.lp_b1 = jnp.zeros((128,), jnp.float32)
        self.lp_w2 = jax.random.normal(k4, (128, out_dim), jnp.float32) * 0.02
        self.lp_b2 = jnp.zeros((out_dim,), jnp.float32)

    def __call__(self, spkemb, alsn, tlsn, active_passive_bit, lsn_id):
        # lsn_id may be a Python list (torch.IntTensor(lsn_id) semantics) or a
        # device array; conversion here is a no-op for device int32 arrays.
        lsn_id = jnp.asarray(lsn_id)
        active_passive_bit = jnp.asarray(active_passive_bit)
        apb, lsnemb = _fused_forward(self.fused_table, active_passive_bit, lsn_id)
        return (spkemb, alsn, tlsn, apb, lsnemb)


if __name__ == "__main__":
    B, S, D = 2, 8, 32  # batch, seq_len, out_dim / hidden

    key = jax.random.PRNGKey(0)
    k_spk, k_a, k_t = jax.random.split(key, 3)
    spkemb = jax.random.normal(k_spk, (B, S, D), jnp.float32)
    alsn = jax.random.normal(k_a, (B, S, D), jnp.float32)
    tlsn = jax.random.normal(k_t, (B, S, D), jnp.float32)
    active_passive_bit = jnp.array([0, 2], dtype=jnp.int32)   # (B,)
    lsn_id = jnp.array([3, 17], dtype=jnp.int32)              # (B,)

    fuser = TextAudioMotionFuserPallas(out_dim=D)
    out_spk, out_a, out_t, apb, lsnemb = fuser(spkemb, alsn, tlsn,
                                               active_passive_bit, lsn_id)
    jax.block_until_ready((out_spk, out_a, out_t, apb, lsnemb))

    # correctness check against pure-JAX reference gathers
    ref_apb = fuser.active_passive_emb[active_passive_bit]
    ref_lsn = fuser.lsn_id_emb[lsn_id][:, None, :]
    assert apb.shape == (B, D) and lsnemb.shape == (B, 1, D)
    assert jnp.allclose(apb, ref_apb, atol=1e-6)
    assert jnp.allclose(lsnemb, ref_lsn, atol=1e-6)
    assert jnp.array_equal(out_spk, spkemb)
    assert jnp.array_equal(out_a, alsn)
    assert jnp.array_equal(out_t, tlsn)

    print("KERNEL_OK")
</pallas_src>

<mosaic_0001>
module attributes {stable_mosaic.version = 11 : i64} {
  func.func @_fused_gather_kernel(%arg0: memref<2xi32, #tpu.memory_space<smem>>, %arg1: memref<2xi32, #tpu.memory_space<smem>>, %arg2: memref<39x32xf32, #tpu.memory_space<vmem>>, %arg3: memref<2x32xf32, #tpu.memory_space<vmem>>, %arg4: memref<2x32xf32, #tpu.memory_space<vmem>>) attributes {dimension_semantics = [], scalar_prefetch = 0 : i64, scratch_operands = 0 : i64, tpu.core_type = #tpu.core_type<tc>} {
    %c0 = arith.constant 0 : index
    %0 = memref.load %arg0[%c0] : memref<2xi32, #tpu.memory_space<smem>>
    %c0_i32 = arith.constant 0 : i32
    %c2_i32 = arith.constant 2 : i32
    %1 = arith.maxsi %c0_i32, %0 : i32
    %2 = arith.minsi %c2_i32, %1 : i32
    %c0_0 = arith.constant 0 : index
    %3 = memref.load %arg1[%c0_0] : memref<2xi32, #tpu.memory_space<smem>>
    %c3_i32 = arith.constant 3 : i32
    %4 = arith.addi %3, %c3_i32 : i32
    %c3_i32_1 = arith.constant 3 : i32
    %c38_i32 = arith.constant 38 : i32
    %5 = arith.maxsi %c3_i32_1, %4 : i32
    %6 = arith.minsi %c38_i32, %5 : i32
    %7 = arith.index_cast %2 : i32 to index
    %c0_2 = arith.constant 0 : index
    %8 = vector.load %arg2[%7, %c0_2] : memref<39x32xf32, #tpu.memory_space<vmem>>, vector<1x32xf32>
    %c0_3 = arith.constant 0 : index
    %c0_4 = arith.constant 0 : index
    %9 = vector.load %arg3[%c0_3, %c0_4] : memref<2x32xf32, #tpu.memory_space<vmem>>, vector<1x32xf32>
    tpu.vector_store %arg3[%c0_3, %c0_4], %8 {strides = array<i32>} : memref<2x32xf32, #tpu.memory_space<vmem>>, vector<1x32xf32>,
    %10 = arith.index_cast %6 : i32 to index
    %c0_5 = arith.constant 0 : index
    %11 = vector.load %arg2[%10, %c0_5] : memref<39x32xf32, #tpu.memory_space<vmem>>, vector<1x32xf32>
    %c0_6 = arith.constant 0 : index
    %c0_7 = arith.constant 0 : index
    %12 = vector.load %arg4[%c0_6, %c0_7] : memref<2x32xf32, #tpu.memory_space<vmem>>, vector<1x32xf32>
    tpu.vector_store %arg4[%c0_6, %c0_7], %11 {strides = array<i32>} : memref<2x32xf32, #tpu.memory_space<vmem>>, vector<1x32xf32>,
    %c1 = arith.constant 1 : index
    %13 = memref.load %arg0[%c1] : memref<2xi32, #tpu.memory_space<smem>>
    %c0_i32_8 = arith.constant 0 : i32
    %c2_i32_9 = arith.constant 2 : i32
    %14 = arith.maxsi %c0_i32_8, %13 : i32
    %15 = arith.minsi %c2_i32_9, %14 : i32
    %c1_10 = arith.constant 1 : index
    %16 = memref.load %arg1[%c1_10] : memref<2xi32, #tpu.memory_space<smem>>
    %c3_i32_11 = arith.constant 3 : i32
    %17 = arith.addi %16, %c3_i32_11 : i32
    %c3_i32_12 = arith.constant 3 : i32
    %c38_i32_13 = arith.constant 38 : i32
    %18 = arith.maxsi %c3_i32_12, %17 : i32
    %19 = arith.minsi %c38_i32_13, %18 : i32
    %20 = arith.index_cast %15 : i32 to index
    %c0_14 = arith.constant 0 : index
    %21 = vector.load %arg2[%20, %c0_14] : memref<39x32xf32, #tpu.memory_space<vmem>>, vector<1x32xf32>
    %c1_15 = arith.constant 1 : index
    %c0_16 = arith.constant 0 : index
    %22 = vector.load %arg3[%c1_15, %c0_16] : memref<2x32xf32, #tpu.memory_space<vmem>>, vector<1x32xf32>
    tpu.vector_store %arg3[%c1_15, %c0_16], %21 {strides = array<i32>} : memref<2x32xf32, #tpu.memory_space<vmem>>, vector<1x32xf32>,
    %23 = arith.index_cast %19 : i32 to index
    %c0_17 = arith.constant 0 : index
    %24 = vector.load %arg2[%23, %c0_17] : memref<39x32xf32, #tpu.memory_space<vmem>>, vector<1x32xf32>
    %c1_18 = arith.constant 1 : index
    %c0_19 = arith.constant 0 : index
    %25 = vector.load %arg4[%c1_18, %c0_19] : memref<2x32xf32, #tpu.memory_space<vmem>>, vector<1x32xf32>
    tpu.vector_store %arg4[%c1_18, %c0_19], %24 {strides = array<i32>} : memref<2x32xf32, #tpu.memory_space<vmem>>, vector<1x32xf32>,
    return
  }
}

</mosaic_0001>

<llo_original>
// kernel: _fused_forward.1
$region0: #{_fused_forward.1}
  #allocation0 [shape = 'u32[]', space=smem, size = 0x4, offset = 0x4, fixed_abs, tag = 'smem constant byte address 0x4 - core index']
  #allocation1 [shape = 'u32[144,128]{1,0:T(1,128)}', space=vmem, size = 0x12000, scoped, tag = 'internal scratch']
  %s0 = inlined_call_operand.vmem [shape: s32[2], index: 0, kind: input, shape index: {}]
  %s1 = inlined_call_operand.vmem [shape: s32[2], index: 1, kind: input, shape index: {}]
  %s2 = inlined_call_operand.vmem [shape: f32[39,32], index: 2, kind: input, shape index: {}]
  %s3 = inlined_call_operand.hbm [shape: f32[2,32], index: 3, kind: output, shape index: {0}]
  %s4 = inlined_call_operand.hbm [shape: f32[2,32], index: 4, kind: output, shape index: {1}]
  %5 = xla_tuple %s3, %s4
  %s6 = sld [smem:[#allocation0]]
  $region38: #{_fused_forward.1} parent=0
    _
  %s8 = ssub.s32 1, %s6
  %s9 = scalar_select 0, %s8, %s6
  $region1: #{_fused_forward.1} parent=0
    #allocation2 [shape = 'u8[512]{0}', space=smem, size = 0x200, scoped, tag = 'input window, operand 0, single buffered']
    #allocation3 [shape = 's32[1]{0}', space=sflag, size = 0x4, scoped, tag = 'scoped memory for _fused_forward.1']
    #allocation4 [shape = 's32[1]{0}', space=sflag, size = 0x4, scoped, tag = 'scoped memory for _fused_forward.1']
    #allocation5 [shape = 'u8[512]{0}', space=smem, size = 0x200, scoped, tag = 'input window, operand 1, single buffered']
    #allocation6 [shape = 's32[1]{0}', space=sflag, size = 0x4, scoped, tag = 'scoped memory for _fused_forward.1']
    #allocation7 [shape = 'u8[1024]{0}', space=vmem, size = 0x400, scoped, tag = 'output window, operand 0, single buffered']
    #allocation8 [shape = 'u8[1024]{0}', space=vmem, size = 0x400, scoped, tag = 'output window, operand 1, single buffered']
    #allocation9 [shape = 's32[1]{0}', space=sflag, size = 0x4, scoped, tag = 'scoped memory for _fused_forward.1']
    %10 = vsyncpa [#allocation4], 0
    %11 = vsyncpa [#allocation6], 0
    %12 = vsyncpa [#allocation3], 0
    %13 = vsyncpa [#allocation9], 0
    // Predicated region
    $region2: #{_fused_forward.1} parent=1 // pred_check
      _
    $region3: #{_fused_forward.1} parent=1 // pred_check_branch
      %15 = sbr.rel (0) target = $region5
    $region4: #{_fused_forward.1} parent=1 // pred_region
      %s17 = ssub.s32 16, 16
      %18 = vsyncadd [#allocation4], %s17
      %s20 = sshll.u32 %s0, 4
      %s21 = int_to_ptr.vmem [resolvable:$true] %s20
      %23 = dma.vmem_to_smem %s21, 16, [#allocation2], [#allocation4]
    $region5: #{_fused_forward.1} parent=1 // pred_fallthru
      _
    // Predicated region
    $region6: #{_fused_forward.1} parent=1 // pred_check
      _
    $region7: #{_fused_forward.1} parent=1 // pred_check_branch
      %25 = sbr.rel (0) target = $region9
    $region8: #{_fused_forward.1} parent=1 // pred_region
      %s27 = ssub.s32 16, 16
      %28 = vsyncadd [#allocation6], %s27
      %s30 = sshll.u32 %s1, 4
      %s31 = int_to_ptr.vmem [resolvable:$true] %s30
      %33 = dma.vmem_to_smem %s31, 16, [#allocation5], [#allocation6]
    $region9: #{_fused_forward.1} parent=1 // pred_fallthru
      _
    // Predicated region
    $region10: #{_fused_forward.1} parent=1 // pred_check
      _
    $region11: #{_fused_forward.1} parent=1 // pred_check_branch
      %35 = sbr.rel (0) target = $region13
    $region12: #{_fused_forward.1} parent=1 // pred_region
      _
    $region13: #{_fused_forward.1} parent=1 // pred_fallthru
      _
    // Predicated region
    $region14: #{_fused_forward.1} parent=1 // pred_check
      _
    $region15: #{_fused_forward.1} parent=1 // pred_check_branch
      %37 = sbr.rel (0) target = $region17
    $region16: #{_fused_forward.1} parent=1 // pred_region
      %38 = dma.done [#allocation4], 16
    $region17: #{_fused_forward.1} parent=1 // pred_fallthru
      _
    // Predicated region
    $region18: #{_fused_forward.1} parent=1 // pred_check
      _
    $region19: #{_fused_forward.1} parent=1 // pred_check_branch
      %40 = sbr.rel (0) target = $region21
    $region20: #{_fused_forward.1} parent=1 // pred_region
      %41 = dma.done [#allocation6], 16
    $region21: #{_fused_forward.1} parent=1 // pred_fallthru
      _
    %42 = sfence
    %s43 = sld [smem:[#allocation2]]
    %p44 = scmp.gt.s32.totalorder %s43, 0
    %s45 = scalar_select %p44, %s43, 0
    %p46 = scmp.lt.s32.totalorder %s45, 2
    %s47 = scalar_select %p46, %s45, 2
    %s48 = sld [smem:[#allocation5]]
    %s49 = sadd.s32 %s48, 3
    %p50 = scmp.gt.s32.totalorder %s49, 3
    %s51 = scalar_select %p50, %s49, 3
    %p52 = scmp.lt.s32.totalorder %s51, 38
    %s53 = scalar_select %p52, %s51, 38
    %s54 = scalar_lea.vmem %s2, %s47
    %v55 = vld [vmem:[%s54] sm:$0x1]
    %vm56 = vcmask 253952
    %57 = vst.msk [vmem:[#allocation7] sm:$0x1] %vm56, %v55
    %s58 = scalar_lea.vmem %s2, %s53
    %v59 = vld [vmem:[%s58] sm:$0x1]
    %60 = vst.msk [vmem:[#allocation8] sm:$0x1] %vm56, %v59
    %s61 = sld [smem:[#allocation2 + $0x1]]
    %p62 = scmp.gt.s32.totalorder %s61, 0
    %s63 = scalar_select %p62, %s61, 0
    %p64 = scmp.lt.s32.totalorder %s63, 2
    %s65 = scalar_select %p64, %s63, 2
    %s66 = sld [smem:[#allocation5 + $0x1]]
    %s67 = sadd.s32 %s66, 3
    %p68 = scmp.gt.s32.totalorder %s67, 3
    %s69 = scalar_select %p68, %s67, 3
    %p70 = scmp.lt.s32.totalorder %s69, 38
    %s71 = scalar_select %p70, %s69, 38
    %s72 = scalar_lea.vmem %s2, %s65
    %v73 = vld [vmem:[%s72] sm:$0x1]
    %74 = vst.msk [vmem:[#allocation7 + $0x1] sm:$0x1] %vm56, %v73
    %s75 = scalar_lea.vmem %s2, %s71
    %v76 = vld [vmem:[%s75] sm:$0x1]
    %77 = vst.msk [vmem:[#allocation8 + $0x1] sm:$0x1] %vm56, %v76
    // Predicated region
    $region22: #{_fused_forward.1} parent=1 // pred_check
      _
    $region23: #{_fused_forward.1} parent=1 // pred_check_branch
      %79 = sbr.rel (0) target = $region25
    $region24: #{_fused_forward.1} parent=1 // pred_region
      %s81 = ssub.s32 32, 32
      %82 = vsyncadd [#allocation3], %s81
      %s84 = sshll.u32 [#allocation7], 4
      %s85 = int_to_ptr.vmem [resolvable:$true] %s84
      %87 = dma.vmem_to_hbm [thread:$0]  %s85, 32, %s3, [#allocation3]
    $region25: #{_fused_forward.1} parent=1 // pred_fallthru
      _
    // Predicated region
    $region26: #{_fused_forward.1} parent=1 // pred_check
      _
    $region27: #{_fused_forward.1} parent=1 // pred_check_branch
      %89 = sbr.rel (0) target = $region29
    $region28: #{_fused_forward.1} parent=1 // pred_region
      %s91 = ssub.s32 32, 32
      %92 = vsyncadd [#allocation9], %s91
      %s94 = sshll.u32 [#allocation8], 4
      %s95 = int_to_ptr.vmem [resolvable:$true] %s94
      %97 = dma.vmem_to_hbm [thread:$0]  %s95, 32, %s4, [#allocation9]
    $region29: #{_fused_forward.1} parent=1 // pred_fallthru
      _
    // Predicated region
    $region30: #{_fused_forward.1} parent=1 // pred_check
      _
    $region31: #{_fused_forward.1} parent=1 // pred_check_branch
      %99 = sbr.rel (0) target = $region33
    $region32: #{_fused_forward.1} parent=1 // pred_region
      %100 = dma.done [#allocation3], 32
    $region33: #{_fused_forward.1} parent=1 // pred_fallthru
      _
    // Predicated region
    $region34: #{_fused_forward.1} parent=1 // pred_check
      _
    $region35: #{_fused_forward.1} parent=1 // pred_check_branch
      %102 = sbr.rel (0) target = $region37
    $region36: #{_fused_forward.1} parent=1 // pred_region
      %103 = dma.done [#allocation9], 32
    $region37: #{_fused_forward.1} parent=1 // pred_fallthru
      _
    %104 = vsyncpa [#allocation3], 1
    %105 = vsyncpa [#allocation9], 1
    %106 = vsyncpa [#allocation4], 1
    %107 = vsyncpa [#allocation6], 1

</llo_original>
